<compile_context>
chip_gen: v7x
topology: tpu7x:2x2x1
jax: 0.10.0
libtpu: 0.0.40
codegen_flags: <defaults>
</compile_context>

<pallas_src>
import jax
import jax.numpy as jnp
from jax.experimental import pallas as pl
from jax.experimental.pallas import tpu as pltpu

IN1, H1, H2, OUT = 5, 3, 2, 1   # layer widths: 5 -> 3 -> 2 -> 1
LANES = 128                      # lane width of a vreg


def _round_up(a: int, b: int) -> int:
    return ((a + b - 1) // b) * b


def _sigmoid(z):
    # exp/tanh run in the otherwise-idle EUP slot; no VALU divide.
    return 0.5 * jnp.tanh(0.5 * z) + 0.5


def mlp_kernel(w1_ref, b1_ref, w2_ref, b2_ref, w3_ref, b3_ref, x_ref, o_ref):
    # x_ref: (IN1, TILE_B, 128) in VMEM — batch packed on sublanes+lanes.
    # o_ref: (TILE_B, 128).
    # w*/b* refs: tiny float32 arrays in SMEM (scalar reads, VPU broadcast).
    rows = [x_ref[k] for k in range(IN1)]        # each (TILE_B, 128), fully dense

    # Layer 1: h1_j = sigmoid(sum_k w1[j,k] * x_k + b1[j])
    h1 = [
        _sigmoid(sum(w1_ref[j, k] * rows[k] for k in range(IN1)) + b1_ref[j])
        for j in range(H1)
    ]
    # Layer 2
    h2 = [
        _sigmoid(sum(w2_ref[j, k] * h1[k] for k in range(H1)) + b2_ref[j])
        for j in range(H2)
    ]
    # Layer 3: single output channel
    h3 = _sigmoid(sum(w3_ref[0, k] * h2[k] for k in range(H2)) + b3_ref[0])
    o_ref[...] = h3.astype(o_ref.dtype)


def multiply_forward(x, params, *, block_rows=1024):
    """x: (N, 5) float32; params: PyTorch-convention (out, in) weights/biases.

    Returns (N, 1) float32, matching the torch module's forward.
    block_rows: sublane-rows per grid step; 1024 rows * 128 lanes ~= 128K batch
    elements (~2.6 MB of x) per step.
    """
    N = x.shape[0]

    # --- layout: batch on (sublane, lane); features on the leading axis -----
    n_lane = _round_up(max(N, 1), LANES)
    n_rows = n_lane // LANES

    # Tile over sublane-rows: multiple of 8, and capped so the grid keeps >=2
    # steps when possible (so v7x's 2 TCs both participate).
    tile_b = block_rows
    if n_rows >= 2:
        tile_b = min(tile_b, _round_up(n_rows, 2) // 2)
    tile_b = max(8, _round_up(tile_b, 8))
    tile_b = min(tile_b, _round_up(n_rows, 8))
    rows_pad = _round_up(n_rows, tile_b)
    n_pad = rows_pad * LANES

    # Single fused pad of the transposed view (no zeros().at[].set() HBM pass).
    # TODO(synk): callers holding feature-major (5, N) data can pass it directly
    # and skip this transpose entirely.
    x_t = jnp.pad(x.T, ((0, 0), (0, n_pad - N)))           # (IN1, n_pad)
    x_t = x_t.reshape(IN1, rows_pad, LANES)                 # (IN1, rows, 128)

    smem = pl.BlockSpec(memory_space=pltpu.MemorySpace.SMEM)
    grid = (rows_pad // tile_b,)

    out = pl.pallas_call(
        mlp_kernel,
        out_shape=jax.ShapeDtypeStruct((rows_pad, LANES), x.dtype),
        grid=grid,
        in_specs=[smem, smem, smem, smem, smem, smem,
                  pl.BlockSpec((IN1, tile_b, LANES), lambda i: (0, i, 0))],
        out_specs=pl.BlockSpec((tile_b, LANES), lambda i: (i, 0)),
        compiler_params=pltpu.CompilerParams(
            dimension_semantics=("parallel",),      # 2-TC sharding on v7x
            vmem_limit_bytes=32 * 1024 * 1024,      # fits v7x's 64 MiB physical
        ),
    )(params["w1"], params["b1"], params["w2"], params["b2"],
      params["w3"], params["b3"], x_t)

    # Flatten (rows, 128) back to the batch axis and drop padding.
    return out.reshape(-1, 1)[:N, :]


def init_params(key):
    k1, k2, k3, k4, k5, k6 = jax.random.split(key, 6)
    # Shapes follow torch.nn.Linear (out_features, in_features) convention.
    return {
        "w1": jax.random.normal(k1, (H1, IN1), jnp.float32) * 0.5,
        "b1": jax.random.normal(k2, (H1,), jnp.float32) * 0.1,
        "w2": jax.random.normal(k3, (H2, H1), jnp.float32) * 0.5,
        "b2": jax.random.normal(k4, (H2,), jnp.float32) * 0.1,
        "w3": jax.random.normal(k5, (OUT, H2), jnp.float32) * 0.5,
        "b3": jax.random.normal(k6, (OUT,), jnp.float32) * 0.1,
    }


def reference_forward(x, p):
    h1 = jax.nn.sigmoid(x @ p["w1"].T + p["b1"])
    h2 = jax.nn.sigmoid(h1 @ p["w2"].T + p["b2"])
    h3 = jax.nn.sigmoid(h2 @ p["w3"].T + p["b3"])
    return h3


if __name__ == "__main__":
    key = jax.random.PRNGKey(0)
    kx, kx2, kp = jax.random.split(key, 3)
    params = init_params(kp)

    # Small batch (matches the torch module's intended use).
    x = jax.random.normal(kx, (8, 5), jnp.float32)
    out = jax.block_until_ready(multiply_forward(x, params))
    ref = reference_forward(x, params)
    assert out.shape == (8, 1), out.shape
    assert jnp.allclose(out, ref, atol=1e-5, rtol=1e-5)

    # Slightly larger batch to exercise the sublane+lane packing and a >1 grid.
    x2 = jax.random.normal(kx2, (2048, 5), jnp.float32)
    out2 = jax.block_until_ready(multiply_forward(x2, params))
    ref2 = reference_forward(x2, params)
    assert out2.shape == (2048, 1), out2.shape
    assert jnp.allclose(out2, ref2, atol=1e-5, rtol=1e-5)

    print("KERNEL_OK")
</pallas_src>

<mosaic_0001>
module attributes {stable_mosaic.version = 11 : i64} {
  func.func @mlp_kernel(%arg0: i32, %arg1: memref<3x5xf32, #tpu.memory_space<smem>>, %arg2: memref<3xf32, #tpu.memory_space<smem>>, %arg3: memref<2x3xf32, #tpu.memory_space<smem>>, %arg4: memref<2xf32, #tpu.memory_space<smem>>, %arg5: memref<1x2xf32, #tpu.memory_space<smem>>, %arg6: memref<1xf32, #tpu.memory_space<smem>>, %arg7: memref<5x8x128xf32, #tpu.memory_space<vmem>>, %arg8: memref<8x128xf32, #tpu.memory_space<vmem>>) attributes {dimension_semantics = [#tpu.dimension_semantics<parallel>], iteration_bounds = array<i64: 1>, scalar_prefetch = 0 : i64, scratch_operands = 0 : i64, tpu.core_type = #tpu.core_type<tc>, window_params = [{transform_indices = @transform_0, window_bounds = array<i64: 3, 5>}, {transform_indices = @transform_1, window_bounds = array<i64: 3>}, {transform_indices = @transform_2, window_bounds = array<i64: 2, 3>}, {transform_indices = @transform_3, window_bounds = array<i64: 2>}, {transform_indices = @transform_4, window_bounds = array<i64: 1, 2>}, {transform_indices = @transform_5, window_bounds = array<i64: 1>}, {transform_indices = @transform_6, window_bounds = array<i64: 5, 8, 128>}, {transform_indices = @transform_7, window_bounds = array<i64: 8, 128>}]} {
    %c0 = arith.constant 0 : index
    %c0_0 = arith.constant 0 : index
    %c0_1 = arith.constant 0 : index
    %0 = vector.load %arg7[%c0, %c0_0, %c0_1] : memref<5x8x128xf32, #tpu.memory_space<vmem>>, vector<1x8x128xf32>
    %1 = vector.shape_cast %0 : vector<1x8x128xf32> to vector<8x128xf32>
    %c1 = arith.constant 1 : index
    %c0_2 = arith.constant 0 : index
    %c0_3 = arith.constant 0 : index
    %2 = vector.load %arg7[%c1, %c0_2, %c0_3] : memref<5x8x128xf32, #tpu.memory_space<vmem>>, vector<1x8x128xf32>
    %3 = vector.shape_cast %2 : vector<1x8x128xf32> to vector<8x128xf32>
    %c2 = arith.constant 2 : index
    %c0_4 = arith.constant 0 : index
    %c0_5 = arith.constant 0 : index
    %4 = vector.load %arg7[%c2, %c0_4, %c0_5] : memref<5x8x128xf32, #tpu.memory_space<vmem>>, vector<1x8x128xf32>
    %5 = vector.shape_cast %4 : vector<1x8x128xf32> to vector<8x128xf32>
    %c3 = arith.constant 3 : index
    %c0_6 = arith.constant 0 : index
    %c0_7 = arith.constant 0 : index
    %6 = vector.load %arg7[%c3, %c0_6, %c0_7] : memref<5x8x128xf32, #tpu.memory_space<vmem>>, vector<1x8x128xf32>
    %7 = vector.shape_cast %6 : vector<1x8x128xf32> to vector<8x128xf32>
    %c4 = arith.constant 4 : index
    %c0_8 = arith.constant 0 : index
    %c0_9 = arith.constant 0 : index
    %8 = vector.load %arg7[%c4, %c0_8, %c0_9] : memref<5x8x128xf32, #tpu.memory_space<vmem>>, vector<1x8x128xf32>
    %9 = vector.shape_cast %8 : vector<1x8x128xf32> to vector<8x128xf32>
    %c0_10 = arith.constant 0 : index
    %c0_11 = arith.constant 0 : index
    %10 = memref.load %arg1[%c0_10, %c0_11] : memref<3x5xf32, #tpu.memory_space<smem>>
    %11 = vector.broadcast %10 : f32 to vector<8x128xf32>
    %12 = arith.mulf %11, %1 : vector<8x128xf32>
    %cst = arith.constant 0.000000e+00 : f32
    %13 = vector.broadcast %cst : f32 to vector<8x128xf32>
    %14 = arith.addf %13, %12 : vector<8x128xf32>
    %c0_12 = arith.constant 0 : index
    %c1_13 = arith.constant 1 : index
    %15 = memref.load %arg1[%c0_12, %c1_13] : memref<3x5xf32, #tpu.memory_space<smem>>
    %16 = vector.broadcast %15 : f32 to vector<8x128xf32>
    %17 = arith.mulf %16, %3 : vector<8x128xf32>
    %18 = arith.addf %14, %17 : vector<8x128xf32>
    %c0_14 = arith.constant 0 : index
    %c2_15 = arith.constant 2 : index
    %19 = memref.load %arg1[%c0_14, %c2_15] : memref<3x5xf32, #tpu.memory_space<smem>>
    %20 = vector.broadcast %19 : f32 to vector<8x128xf32>
    %21 = arith.mulf %20, %5 : vector<8x128xf32>
    %22 = arith.addf %18, %21 : vector<8x128xf32>
    %c0_16 = arith.constant 0 : index
    %c3_17 = arith.constant 3 : index
    %23 = memref.load %arg1[%c0_16, %c3_17] : memref<3x5xf32, #tpu.memory_space<smem>>
    %24 = vector.broadcast %23 : f32 to vector<8x128xf32>
    %25 = arith.mulf %24, %7 : vector<8x128xf32>
    %26 = arith.addf %22, %25 : vector<8x128xf32>
    %c0_18 = arith.constant 0 : index
    %c4_19 = arith.constant 4 : index
    %27 = memref.load %arg1[%c0_18, %c4_19] : memref<3x5xf32, #tpu.memory_space<smem>>
    %28 = vector.broadcast %27 : f32 to vector<8x128xf32>
    %29 = arith.mulf %28, %9 : vector<8x128xf32>
    %30 = arith.addf %26, %29 : vector<8x128xf32>
    %c0_20 = arith.constant 0 : index
    %31 = memref.load %arg2[%c0_20] : memref<3xf32, #tpu.memory_space<smem>>
    %32 = vector.broadcast %31 : f32 to vector<8x128xf32>
    %33 = arith.addf %30, %32 : vector<8x128xf32>
    %cst_21 = arith.constant 5.000000e-01 : f32
    %34 = vector.broadcast %cst_21 : f32 to vector<8x128xf32>
    %35 = arith.mulf %34, %33 : vector<8x128xf32>
    %36 = math.tanh %35 : vector<8x128xf32>
    %cst_22 = arith.constant 5.000000e-01 : f32
    %37 = vector.broadcast %cst_22 : f32 to vector<8x128xf32>
    %38 = arith.mulf %37, %36 : vector<8x128xf32>
    %cst_23 = arith.constant 5.000000e-01 : f32
    %39 = vector.broadcast %cst_23 : f32 to vector<8x128xf32>
    %40 = arith.addf %38, %39 : vector<8x128xf32>
    %c1_24 = arith.constant 1 : index
    %c0_25 = arith.constant 0 : index
    %41 = memref.load %arg1[%c1_24, %c0_25] : memref<3x5xf32, #tpu.memory_space<smem>>
    %42 = vector.broadcast %41 : f32 to vector<8x128xf32>
    %43 = arith.mulf %42, %1 : vector<8x128xf32>
    %cst_26 = arith.constant 0.000000e+00 : f32
    %44 = vector.broadcast %cst_26 : f32 to vector<8x128xf32>
    %45 = arith.addf %44, %43 : vector<8x128xf32>
    %c1_27 = arith.constant 1 : index
    %c1_28 = arith.constant 1 : index
    %46 = memref.load %arg1[%c1_27, %c1_28] : memref<3x5xf32, #tpu.memory_space<smem>>
    %47 = vector.broadcast %46 : f32 to vector<8x128xf32>
    %48 = arith.mulf %47, %3 : vector<8x128xf32>
    %49 = arith.addf %45, %48 : vector<8x128xf32>
    %c1_29 = arith.constant 1 : index
    %c2_30 = arith.constant 2 : index
    %50 = memref.load %arg1[%c1_29, %c2_30] : memref<3x5xf32, #tpu.memory_space<smem>>
    %51 = vector.broadcast %50 : f32 to vector<8x128xf32>
    %52 = arith.mulf %51, %5 : vector<8x128xf32>
    %53 = arith.addf %49, %52 : vector<8x128xf32>
    %c1_31 = arith.constant 1 : index
    %c3_32 = arith.constant 3 : index
    %54 = memref.load %arg1[%c1_31, %c3_32] : memref<3x5xf32, #tpu.memory_space<smem>>
    %55 = vector.broadcast %54 : f32 to vector<8x128xf32>
    %56 = arith.mulf %55, %7 : vector<8x128xf32>
    %57 = arith.addf %53, %56 : vector<8x128xf32>
    %c1_33 = arith.constant 1 : index
    %c4_34 = arith.constant 4 : index
    %58 = memref.load %arg1[%c1_33, %c4_34] : memref<3x5xf32, #tpu.memory_space<smem>>
    %59 = vector.broadcast %58 : f32 to vector<8x128xf32>
    %60 = arith.mulf %59, %9 : vector<8x128xf32>
    %61 = arith.addf %57, %60 : vector<8x128xf32>
    %c1_35 = arith.constant 1 : index
    %62 = memref.load %arg2[%c1_35] : memref<3xf32, #tpu.memory_space<smem>>
    %63 = vector.broadcast %62 : f32 to vector<8x128xf32>
    %64 = arith.addf %61, %63 : vector<8x128xf32>
    %cst_36 = arith.constant 5.000000e-01 : f32
    %65 = vector.broadcast %cst_36 : f32 to vector<8x128xf32>
    %66 = arith.mulf %65, %64 : vector<8x128xf32>
    %67 = math.tanh %66 : vector<8x128xf32>
    %cst_37 = arith.constant 5.000000e-01 : f32
    %68 = vector.broadcast %cst_37 : f32 to vector<8x128xf32>
    %69 = arith.mulf %68, %67 : vector<8x128xf32>
    %cst_38 = arith.constant 5.000000e-01 : f32
    %70 = vector.broadcast %cst_38 : f32 to vector<8x128xf32>
    %71 = arith.addf %69, %70 : vector<8x128xf32>
    %c2_39 = arith.constant 2 : index
    %c0_40 = arith.constant 0 : index
    %72 = memref.load %arg1[%c2_39, %c0_40] : memref<3x5xf32, #tpu.memory_space<smem>>
    %73 = vector.broadcast %72 : f32 to vector<8x128xf32>
    %74 = arith.mulf %73, %1 : vector<8x128xf32>
    %cst_41 = arith.constant 0.000000e+00 : f32
    %75 = vector.broadcast %cst_41 : f32 to vector<8x128xf32>
    %76 = arith.addf %75, %74 : vector<8x128xf32>
    %c2_42 = arith.constant 2 : index
    %c1_43 = arith.constant 1 : index
    %77 = memref.load %arg1[%c2_42, %c1_43] : memref<3x5xf32, #tpu.memory_space<smem>>
    %78 = vector.broadcast %77 : f32 to vector<8x128xf32>
    %79 = arith.mulf %78, %3 : vector<8x128xf32>
    %80 = arith.addf %76, %79 : vector<8x128xf32>
    %c2_44 = arith.constant 2 : index
    %c2_45 = arith.constant 2 : index
    %81 = memref.load %arg1[%c2_44, %c2_45] : memref<3x5xf32, #tpu.memory_space<smem>>
    %82 = vector.broadcast %81 : f32 to vector<8x128xf32>
    %83 = arith.mulf %82, %5 : vector<8x128xf32>
    %84 = arith.addf %80, %83 : vector<8x128xf32>
    %c2_46 = arith.constant 2 : index
    %c3_47 = arith.constant 3 : index
    %85 = memref.load %arg1[%c2_46, %c3_47] : memref<3x5xf32, #tpu.memory_space<smem>>
    %86 = vector.broadcast %85 : f32 to vector<8x128xf32>
    %87 = arith.mulf %86, %7 : vector<8x128xf32>
    %88 = arith.addf %84, %87 : vector<8x128xf32>
    %c2_48 = arith.constant 2 : index
    %c4_49 = arith.constant 4 : index
    %89 = memref.load %arg1[%c2_48, %c4_49] : memref<3x5xf32, #tpu.memory_space<smem>>
    %90 = vector.broadcast %89 : f32 to vector<8x128xf32>
    %91 = arith.mulf %90, %9 : vector<8x128xf32>
    %92 = arith.addf %88, %91 : vector<8x128xf32>
    %c2_50 = arith.constant 2 : index
    %93 = memref.load %arg2[%c2_50] : memref<3xf32, #tpu.memory_space<smem>>
    %94 = vector.broadcast %93 : f32 to vector<8x128xf32>
    %95 = arith.addf %92, %94 : vector<8x128xf32>
    %cst_51 = arith.constant 5.000000e-01 : f32
    %96 = vector.broadcast %cst_51 : f32 to vector<8x128xf32>
    %97 = arith.mulf %96, %95 : vector<8x128xf32>
    %98 = math.tanh %97 : vector<8x128xf32>
    %cst_52 = arith.constant 5.000000e-01 : f32
    %99 = vector.broadcast %cst_52 : f32 to vector<8x128xf32>
    %100 = arith.mulf %99, %98 : vector<8x128xf32>
    %cst_53 = arith.constant 5.000000e-01 : f32
    %101 = vector.broadcast %cst_53 : f32 to vector<8x128xf32>
    %102 = arith.addf %100, %101 : vector<8x128xf32>
    %c0_54 = arith.constant 0 : index
    %c0_55 = arith.constant 0 : index
    %103 = memref.load %arg3[%c0_54, %c0_55] : memref<2x3xf32, #tpu.memory_space<smem>>
    %104 = vector.broadcast %103 : f32 to vector<8x128xf32>
    %105 = arith.mulf %104, %40 : vector<8x128xf32>
    %cst_56 = arith.constant 0.000000e+00 : f32
    %106 = vector.broadcast %cst_56 : f32 to vector<8x128xf32>
    %107 = arith.addf %106, %105 : vector<8x128xf32>
    %c0_57 = arith.constant 0 : index
    %c1_58 = arith.constant 1 : index
    %108 = memref.load %arg3[%c0_57, %c1_58] : memref<2x3xf32, #tpu.memory_space<smem>>
    %109 = vector.broadcast %108 : f32 to vector<8x128xf32>
    %110 = arith.mulf %109, %71 : vector<8x128xf32>
    %111 = arith.addf %107, %110 : vector<8x128xf32>
    %c0_59 = arith.constant 0 : index
    %c2_60 = arith.constant 2 : index
    %112 = memref.load %arg3[%c0_59, %c2_60] : memref<2x3xf32, #tpu.memory_space<smem>>
    %113 = vector.broadcast %112 : f32 to vector<8x128xf32>
    %114 = arith.mulf %113, %102 : vector<8x128xf32>
    %115 = arith.addf %111, %114 : vector<8x128xf32>
    %c0_61 = arith.constant 0 : index
    %116 = memref.load %arg4[%c0_61] : memref<2xf32, #tpu.memory_space<smem>>
    %117 = vector.broadcast %116 : f32 to vector<8x128xf32>
    %118 = arith.addf %115, %117 : vector<8x128xf32>
    %cst_62 = arith.constant 5.000000e-01 : f32
    %119 = vector.broadcast %cst_62 : f32 to vector<8x128xf32>
    %120 = arith.mulf %119, %118 : vector<8x128xf32>
    %121 = math.tanh %120 : vector<8x128xf32>
    %cst_63 = arith.constant 5.000000e-01 : f32
    %122 = vector.broadcast %cst_63 : f32 to vector<8x128xf32>
    %123 = arith.mulf %122, %121 : vector<8x128xf32>
    %cst_64 = arith.constant 5.000000e-01 : f32
    %124 = vector.broadcast %cst_64 : f32 to vector<8x128xf32>
    %125 = arith.addf %123, %124 : vector<8x128xf32>
    %c1_65 = arith.constant 1 : index
    %c0_66 = arith.constant 0 : index
    %126 = memref.load %arg3[%c1_65, %c0_66] : memref<2x3xf32, #tpu.memory_space<smem>>
    %127 = vector.broadcast %126 : f32 to vector<8x128xf32>
    %128 = arith.mulf %127, %40 : vector<8x128xf32>
    %cst_67 = arith.constant 0.000000e+00 : f32
    %129 = vector.broadcast %cst_67 : f32 to vector<8x128xf32>
    %130 = arith.addf %129, %128 : vector<8x128xf32>
    %c1_68 = arith.constant 1 : index
    %c1_69 = arith.constant 1 : index
    %131 = memref.load %arg3[%c1_68, %c1_69] : memref<2x3xf32, #tpu.memory_space<smem>>
    %132 = vector.broadcast %131 : f32 to vector<8x128xf32>
    %133 = arith.mulf %132, %71 : vector<8x128xf32>
    %134 = arith.addf %130, %133 : vector<8x128xf32>
    %c1_70 = arith.constant 1 : index
    %c2_71 = arith.constant 2 : index
    %135 = memref.load %arg3[%c1_70, %c2_71] : memref<2x3xf32, #tpu.memory_space<smem>>
    %136 = vector.broadcast %135 : f32 to vector<8x128xf32>
    %137 = arith.mulf %136, %102 : vector<8x128xf32>
    %138 = arith.addf %134, %137 : vector<8x128xf32>
    %c1_72 = arith.constant 1 : index
    %139 = memref.load %arg4[%c1_72] : memref<2xf32, #tpu.memory_space<smem>>
    %140 = vector.broadcast %139 : f32 to vector<8x128xf32>
    %141 = arith.addf %138, %140 : vector<8x128xf32>
    %cst_73 = arith.constant 5.000000e-01 : f32
    %142 = vector.broadcast %cst_73 : f32 to vector<8x128xf32>
    %143 = arith.mulf %142, %141 : vector<8x128xf32>
    %144 = math.tanh %143 : vector<8x128xf32>
    %cst_74 = arith.constant 5.000000e-01 : f32
    %145 = vector.broadcast %cst_74 : f32 to vector<8x128xf32>
    %146 = arith.mulf %145, %144 : vector<8x128xf32>
    %cst_75 = arith.constant 5.000000e-01 : f32
    %147 = vector.broadcast %cst_75 : f32 to vector<8x128xf32>
    %148 = arith.addf %146, %147 : vector<8x128xf32>
    %c0_76 = arith.constant 0 : index
    %c0_77 = arith.constant 0 : index
    %149 = memref.load %arg5[%c0_76, %c0_77] : memref<1x2xf32, #tpu.memory_space<smem>>
    %150 = vector.broadcast %149 : f32 to vector<8x128xf32>
    %151 = arith.mulf %150, %125 : vector<8x128xf32>
    %cst_78 = arith.constant 0.000000e+00 : f32
    %152 = vector.broadcast %cst_78 : f32 to vector<8x128xf32>
    %153 = arith.addf %152, %151 : vector<8x128xf32>
    %c0_79 = arith.constant 0 : index
    %c1_80 = arith.constant 1 : index
    %154 = memref.load %arg5[%c0_79, %c1_80] : memref<1x2xf32, #tpu.memory_space<smem>>
    %155 = vector.broadcast %154 : f32 to vector<8x128xf32>
    %156 = arith.mulf %155, %148 : vector<8x128xf32>
    %157 = arith.addf %153, %156 : vector<8x128xf32>
    %c0_81 = arith.constant 0 : index
    %158 = memref.load %arg6[%c0_81] : memref<1xf32, #tpu.memory_space<smem>>
    %159 = vector.broadcast %158 : f32 to vector<8x128xf32>
    %160 = arith.addf %157, %159 : vector<8x128xf32>
    %cst_82 = arith.constant 5.000000e-01 : f32
    %161 = vector.broadcast %cst_82 : f32 to vector<8x128xf32>
    %162 = arith.mulf %161, %160 : vector<8x128xf32>
    %163 = math.tanh %162 : vector<8x128xf32>
    %cst_83 = arith.constant 5.000000e-01 : f32
    %164 = vector.broadcast %cst_83 : f32 to vector<8x128xf32>
    %165 = arith.mulf %164, %163 : vector<8x128xf32>
    %cst_84 = arith.constant 5.000000e-01 : f32
    %166 = vector.broadcast %cst_84 : f32 to vector<8x128xf32>
    %167 = arith.addf %165, %166 : vector<8x128xf32>
    %c0_85 = arith.constant 0 : index
    %c0_86 = arith.constant 0 : index
    %168 = vector.load %arg8[%c0_85, %c0_86] : memref<8x128xf32, #tpu.memory_space<vmem>>, vector<8x128xf32>
    tpu.vector_store %arg8[%c0_85, %c0_86], %167 {strides = array<i32>} : memref<8x128xf32, #tpu.memory_space<vmem>>, vector<8x128xf32>,
    return
  }
  func.func @transform_0(%arg0: i32) -> (i32, i32) {
    %c0_i32 = arith.constant 0 : i32
    %c0_i32_0 = arith.constant 0 : i32
    %c0_i32_1 = arith.constant 0 : i32
    return %c0_i32, %c0_i32_0 : i32, i32
  }
  func.func @transform_1(%arg0: i32) -> i32 {
    %c0_i32 = arith.constant 0 : i32
    %c0_i32_0 = arith.constant 0 : i32
    return %c0_i32 : i32
  }
  func.func @transform_2(%arg0: i32) -> (i32, i32) {
    %c0_i32 = arith.constant 0 : i32
    %c0_i32_0 = arith.constant 0 : i32
    %c0_i32_1 = arith.constant 0 : i32
    return %c0_i32, %c0_i32_0 : i32, i32
  }
  func.func @transform_3(%arg0: i32) -> i32 {
    %c0_i32 = arith.constant 0 : i32
    %c0_i32_0 = arith.constant 0 : i32
    return %c0_i32 : i32
  }
  func.func @transform_4(%arg0: i32) -> (i32, i32) {
    %c0_i32 = arith.constant 0 : i32
    %c0_i32_0 = arith.constant 0 : i32
    %c0_i32_1 = arith.constant 0 : i32
    return %c0_i32, %c0_i32_0 : i32, i32
  }
  func.func @transform_5(%arg0: i32) -> i32 {
    %c0_i32 = arith.constant 0 : i32
    %c0_i32_0 = arith.constant 0 : i32
    return %c0_i32 : i32
  }
  func.func @transform_6(%arg0: i32) -> (i32, i32, i32) {
    %c0_i32 = arith.constant 0 : i32
    %c0_i32_0 = arith.constant 0 : i32
    %c0_i32_1 = arith.constant 0 : i32
    return %c0_i32, %arg0, %c0_i32_0 : i32, i32, i32
  }
  func.func @transform_7(%arg0: i32) -> (i32, i32) {
    %c0_i32 = arith.constant 0 : i32
    %c0_i32_0 = arith.constant 0 : i32
    return %arg0, %c0_i32 : i32, i32
  }
}

</mosaic_0001>

<llo_original>
// kernel: tpu_custom_call.1
$region0: #{tpu_custom_call.1}
  #allocation0 [shape = 'u32[]', space=smem, size = 0x4, offset = 0x4, fixed_abs, tag = 'smem constant byte address 0x4 - core index']
  #allocation1 [shape = 'u32[144,128]{1,0:T(1,128)}', space=vmem, size = 0x12000, scoped, tag = 'internal scratch']
  #allocation2 [shape = 'f32[1]{0:T(128)S(6)}', space=smem, size = 0x200, scoped, tag = 'scoped memory for tpu_custom_call.1']
  %s0 = inlined_call_operand.hbm [shape: f32[3,5], index: 0, kind: input, shape index: {}]
  %s1 = inlined_call_operand.vmem [shape: f32[3], index: 1, kind: input, shape index: {}]
  %s2 = inlined_call_operand.vmem [shape: f32[2,3], index: 2, kind: input, shape index: {}]
  %s3 = inlined_call_operand.vmem [shape: f32[2], index: 3, kind: input, shape index: {}]
  %s4 = inlined_call_operand.vmem [shape: f32[1,2], index: 4, kind: input, shape index: {}]
  %s5 = inlined_call_operand.<no memory space> [shape: f32[1], index: 5, kind: input, shape index: {}]
  %s6 = inlined_call_operand.hbm [shape: f32[5,8,128], index: 6, kind: input, shape index: {}]
  %s7 = inlined_call_operand.hbm [shape: f32[8,128], index: 7, kind: output, shape index: {}]
  %s8 = sld [smem:[#allocation0]]
  $region62: #{tpu_custom_call.1} parent=0
    _
  %s10 = ssub.s32 1, %s8
  %s11 = scalar_select 0, %s10, %s8
  %12 = sst [smem:[#allocation2]] %s5
  $region1: #{tpu_custom_call.1} parent=0
    #allocation3 [shape = 'u8[2048]{0}', space=smem, size = 0x800, scoped, tag = 'input window, operand 0, single buffered']
    #allocation4 [shape = 's32[1]{0}', space=sflag, size = 0x4, scoped, tag = 'scoped memory for tpu_custom_call.1']
    #allocation5 [shape = 's32[1]{0}', space=sflag, size = 0x4, scoped, tag = 'scoped memory for tpu_custom_call.1']
    #allocation6 [shape = 's32[1]{0}', space=sflag, size = 0x4, scoped, tag = 'scoped memory for tpu_custom_call.1']
    #allocation7 [shape = 's32[1]{0}', space=sflag, size = 0x4, scoped, tag = 'scoped memory for tpu_custom_call.1']
    #allocation8 [shape = 'u8[512]{0}', space=smem, size = 0x200, scoped, tag = 'input window, operand 1, single buffered']
    #allocation9 [shape = 'u8[1024]{0}', space=smem, size = 0x400, scoped, tag = 'input window, operand 2, single buffered']
    #allocation10 [shape = 's32[1]{0}', space=sflag, size = 0x4, scoped, tag = 'scoped memory for tpu_custom_call.1']
    #allocation11 [shape = 'u8[512]{0}', space=smem, size = 0x200, scoped, tag = 'input window, operand 3, single buffered']
    #allocation12 [shape = 'u8[512]{0}', space=smem, size = 0x200, scoped, tag = 'input window, operand 4, single buffered']
    #allocation13 [shape = 's32[1]{0}', space=sflag, size = 0x4, scoped, tag = 'scoped memory for tpu_custom_call.1']
    #allocation14 [shape = 'u8[20480]{0}', space=vmem, size = 0x5000, scoped, tag = 'input window, operand 6, single buffered']
    #allocation15 [shape = 'u8[4096]{0}', space=vmem, size = 0x1000, scoped, tag = 'output window, operand 0, single buffered']
    %13 = vsyncpa [#allocation6], 0
    %14 = vsyncpa [#allocation7], 0
    %15 = vsyncpa [#allocation10], 0
    %16 = vsyncpa [#allocation13], 0
    %17 = vsyncpa [#allocation4], 0
    %18 = vsyncpa [#allocation5], 0
    // Predicated region
    $region2: #{tpu_custom_call.1} parent=1 // pred_check
      _
    $region3: #{tpu_custom_call.1} parent=1 // pred_check_branch
      %20 = sbr.rel (0) target = $region5
    $region4: #{tpu_custom_call.1} parent=1 // pred_region
      %s22 = ssub.s32 64, 64
      %23 = vsyncadd [#allocation6], %s22
      %26 = dma.hbm_to_smem %s0, 64, [#allocation3], [#allocation6]
    $region5: #{tpu_custom_call.1} parent=1 // pred_fallthru
      _
    // Predicated region
    $region6: #{tpu_custom_call.1} parent=1 // pred_check
      _
    $region7: #{tpu_custom_call.1} parent=1 // pred_check_branch
      %28 = sbr.rel (0) target = $region9
    $region8: #{tpu_custom_call.1} parent=1 // pred_region
      %s30 = ssub.s32 16, 16
      %31 = vsyncadd [#allocation7], %s30
      %s33 = sshll.u32 %s1, 4
      %s34 = int_to_ptr.vmem [resolvable:$true] %s33
      %36 = dma.vmem_to_smem %s34, 16, [#allocation8], [#allocation7]
    $region9: #{tpu_custom_call.1} parent=1 // pred_fallthru
      _
    // Predicated region
    $region10: #{tpu_custom_call.1} parent=1 // pred_check
      _
    $region11: #{tpu_custom_call.1} parent=1 // pred_check_branch
      %38 = sbr.rel (0) target = $region13
    $region12: #{tpu_custom_call.1} parent=1 // pred_region
      %s40 = ssub.s32 32, 32
      %41 = vsyncadd [#allocation10], %s40
      %s43 = sshll.u32 %s2, 4
      %s44 = int_to_ptr.vmem [resolvable:$true] %s43
      %46 = dma.vmem_to_smem %s44, 32, [#allocation9], [#allocation10]
    $region13: #{tpu_custom_call.1} parent=1 // pred_fallthru
      _
    // Predicated region
    $region14: #{tpu_custom_call.1} parent=1 // pred_check
      _
    $region15: #{tpu_custom_call.1} parent=1 // pred_check_branch
      %48 = sbr.rel (0) target = $region17
    $region16: #{tpu_custom_call.1} parent=1 // pred_region
      %s50 = ssub.s32 16, 16
      %51 = vsyncadd [#allocation10], %s50
      %s53 = sshll.u32 %s3, 4
      %s54 = int_to_ptr.vmem [resolvable:$true] %s53
      %56 = dma.vmem_to_smem %s54, 16, [#allocation11], [#allocation10]
    $region17: #{tpu_custom_call.1} parent=1 // pred_fallthru
      _
    // Predicated region
    $region18: #{tpu_custom_call.1} parent=1 // pred_check
      _
    $region19: #{tpu_custom_call.1} parent=1 // pred_check_branch
      %58 = sbr.rel (0) target = $region21
    $region20: #{tpu_custom_call.1} parent=1 // pred_region
      %s60 = ssub.s32 16, 16
      %61 = vsyncadd [#allocation13], %s60
      %s63 = sshll.u32 %s4, 4
      %s64 = int_to_ptr.vmem [resolvable:$true] %s63
      %66 = dma.vmem_to_smem %s64, 16, [#allocation12], [#allocation13]
    $region21: #{tpu_custom_call.1} parent=1 // pred_fallthru
      _
    // Predicated region
    $region22: #{tpu_custom_call.1} parent=1 // pred_check
      _
    $region23: #{tpu_custom_call.1} parent=1 // pred_check_branch
      %68 = sbr.rel (0) target = $region25
    $region24: #{tpu_custom_call.1} parent=1 // pred_region
      _
    $region25: #{tpu_custom_call.1} parent=1 // pred_fallthru
      _
    // Predicated region
    $region26: #{tpu_custom_call.1} parent=1 // pred_check
      _
    $region27: #{tpu_custom_call.1} parent=1 // pred_check_branch
      %70 = sbr.rel (0) target = $region29
    $region28: #{tpu_custom_call.1} parent=1 // pred_region
      %s72 = ssub.s32 640, 640
      %73 = vsyncadd [#allocation4], %s72
      %s74 = sshll.u32 [#allocation14], 4
      %s75 = int_to_ptr.vmem [resolvable:$true] %s74
      %80 = dma.hbm_to_vmem [thread:$0]  %s6, 640, %s75, [#allocation4], 128, 128, 8
    $region29: #{tpu_custom_call.1} parent=1 // pred_fallthru
      _
    // Predicated region
    $region30: #{tpu_custom_call.1} parent=1 // pred_check
      _
    $region31: #{tpu_custom_call.1} parent=1 // pred_check_branch
      %82 = sbr.rel (0) target = $region33
    $region32: #{tpu_custom_call.1} parent=1 // pred_region
      %83 = dma.done [#allocation6], 64
    $region33: #{tpu_custom_call.1} parent=1 // pred_fallthru
      _
    // Predicated region
    $region34: #{tpu_custom_call.1} parent=1 // pred_check
      _
    $region35: #{tpu_custom_call.1} parent=1 // pred_check_branch
      %85 = sbr.rel (0) target = $region37
    $region36: #{tpu_custom_call.1} parent=1 // pred_region
      %86 = dma.done [#allocation7], 16
    $region37: #{tpu_custom_call.1} parent=1 // pred_fallthru
      _
    // Predicated region
    $region38: #{tpu_custom_call.1} parent=1 // pred_check
      _
    $region39: #{tpu_custom_call.1} parent=1 // pred_check_branch
      %88 = sbr.rel (0) target = $region41
    $region40: #{tpu_custom_call.1} parent=1 // pred_region
      %89 = dma.done [#allocation10], 32
    $region41: #{tpu_custom_call.1} parent=1 // pred_fallthru
      _
    // Predicated region
    $region42: #{tpu_custom_call.1} parent=1 // pred_check
      _
    $region43: #{tpu_custom_call.1} parent=1 // pred_check_branch
      %91 = sbr.rel (0) target = $region45
    $region44: #{tpu_custom_call.1} parent=1 // pred_region
      %92 = dma.done [#allocation10], 16
    $region45: #{tpu_custom_call.1} parent=1 // pred_fallthru
      _
    // Predicated region
    $region46: #{tpu_custom_call.1} parent=1 // pred_check
      _
    $region47: #{tpu_custom_call.1} parent=1 // pred_check_branch
      %94 = sbr.rel (0) target = $region49
    $region48: #{tpu_custom_call.1} parent=1 // pred_region
      %95 = dma.done [#allocation13], 16
    $region49: #{tpu_custom_call.1} parent=1 // pred_fallthru
      _
    // Predicated region
    $region50: #{tpu_custom_call.1} parent=1 // pred_check
      _
    $region51: #{tpu_custom_call.1} parent=1 // pred_check_branch
      %97 = sbr.rel (0) target = $region53
    $region52: #{tpu_custom_call.1} parent=1 // pred_region
      %98 = dma.done [#allocation4], 640
    $region53: #{tpu_custom_call.1} parent=1 // pred_fallthru
      _
    %99 = sfence
    %v100 = vld [vmem:[#allocation14] sm:$0xff]
    %s101 = scalar_lea.vmem [#allocation14], 8
    %v102 = vld [vmem:[%s101] sm:$0xff]
    %s103 = scalar_lea.vmem [#allocation14], 16
    %v104 = vld [vmem:[%s103] sm:$0xff]
    %s105 = scalar_lea.vmem [#allocation14], 24
    %v106 = vld [vmem:[%s105] sm:$0xff]
    %s107 = scalar_lea.vmem [#allocation14], 32
    %v108 = vld [vmem:[%s107] sm:$0xff]
    %s109 = sld [smem:[#allocation3]]
    %v110 = vstv %s109
    %v111 = vmul.f32 %v110, %v100
    %v112 = vadd.f32 %v111, 0.0
    %s113 = sld [smem:[#allocation3 + $0x1]]
    %v114 = vstv %s113
    %v115 = vmul.f32 %v114, %v102
    %v116 = vadd.f32 %v112, %v115
    %s117 = sld [smem:[#allocation3 + $0x2]]
    %v118 = vstv %s117
    %v119 = vmul.f32 %v118, %v104
    %v120 = vadd.f32 %v116, %v119
    %s121 = sld [smem:[#allocation3 + $0x3]]
    %v122 = vstv %s121
    %v123 = vmul.f32 %v122, %v106
    %v124 = vadd.f32 %v120, %v123
    %s125 = sld [smem:[#allocation3 + $0x4]]
    %v126 = vstv %s125
    %v127 = vmul.f32 %v126, %v108
    %v128 = vadd.f32 %v124, %v127
    %s129 = sld [smem:[#allocation8]]
    %v130 = vstv %s129
    %v131 = vadd.f32 %v128, %v130
    %v132 = vmul.f32 %v131, 0.5
    %v133 = vtanh.pop %v132
    %v134 = vmul.f32 %v133, 0.5
    %v135 = vadd.f32 %v134, 0.5
    %s136 = sld [smem:[#allocation3 + $0x80]]
    %v137 = vstv %s136
    %v138 = vmul.f32 %v137, %v100
    %v139 = vadd.f32 %v138, 0.0
    %s140 = sld [smem:[#allocation3 + $0x81]]
    %v141 = vstv %s140
    %v142 = vmul.f32 %v141, %v102
    %v143 = vadd.f32 %v139, %v142
    %s144 = sld [smem:[#allocation3 + $0x82]]
    %v145 = vstv %s144
    %v146 = vmul.f32 %v145, %v104
    %v147 = vadd.f32 %v143, %v146
    %s148 = sld [smem:[#allocation3 + $0x83]]
    %v149 = vstv %s148
    %v150 = vmul.f32 %v149, %v106
    %v151 = vadd.f32 %v147, %v150
    %s152 = sld [smem:[#allocation3 + $0x84]]
    %v153 = vstv %s152
    %v154 = vmul.f32 %v153, %v108
    %v155 = vadd.f32 %v151, %v154
    %s156 = sld [smem:[#allocation8 + $0x1]]
    %v157 = vstv %s156
    %v158 = vadd.f32 %v155, %v157
    %v159 = vmul.f32 %v158, 0.5
    %v160 = vtanh.pop %v159
    %v161 = vmul.f32 %v160, 0.5
    %v162 = vadd.f32 %v161, 0.5
    %s163 = sld [smem:[#allocation3 + $0x100]]
    %v164 = vstv %s163
    %v165 = vmul.f32 %v164, %v100
    %v166 = vadd.f32 %v165, 0.0
    %s167 = sld [smem:[#allocation3 + $0x101]]
    %v168 = vstv %s167
    %v169 = vmul.f32 %v168, %v102
    %v170 = vadd.f32 %v166, %v169
    %s171 = sld [smem:[#allocation3 + $0x102]]
    %v172 = vstv %s171
    %v173 = vmul.f32 %v172, %v104
    %v174 = vadd.f32 %v170, %v173
    %s175 = sld [smem:[#allocation3 + $0x103]]
    %v176 = vstv %s175
    %v177 = vmul.f32 %v176, %v106
    %v178 = vadd.f32 %v174, %v177
    %s179 = sld [smem:[#allocation3 + $0x104]]
    %v180 = vstv %s179
    %v181 = vmul.f32 %v180, %v108
    %v182 = vadd.f32 %v178, %v181
    %s183 = sld [smem:[#allocation8 + $0x2]]
    %v184 = vstv %s183
    %v185 = vadd.f32 %v182, %v184
    %v186 = vmul.f32 %v185, 0.5
    %v187 = vtanh.pop %v186
    %v188 = vmul.f32 %v187, 0.5
    %v189 = vadd.f32 %v188, 0.5
    %s190 = sld [smem:[#allocation9]]
    %v191 = vstv %s190
    %v192 = vmul.f32 %v191, %v135
    %v193 = vadd.f32 %v192, 0.0
    %s194 = sld [smem:[#allocation9 + $0x1]]
    %v195 = vstv %s194
    %v196 = vmul.f32 %v195, %v162
    %v197 = vadd.f32 %v193, %v196
    %s198 = sld [smem:[#allocation9 + $0x2]]
    %v199 = vstv %s198
    %v200 = vmul.f32 %v199, %v189
    %v201 = vadd.f32 %v197, %v200
    %s202 = sld [smem:[#allocation11]]
    %v203 = vstv %s202
    %v204 = vadd.f32 %v201, %v203
    %v205 = vmul.f32 %v204, 0.5
    %v206 = vtanh.pop %v205
    %v207 = vmul.f32 %v206, 0.5
    %v208 = vadd.f32 %v207, 0.5
    %s209 = sld [smem:[#allocation9 + $0x80]]
    %v210 = vstv %s209
    %v211 = vmul.f32 %v210, %v135
    %v212 = vadd.f32 %v211, 0.0
    %s213 = sld [smem:[#allocation9 + $0x81]]
    %v214 = vstv %s213
    %v215 = vmul.f32 %v214, %v162
    %v216 = vadd.f32 %v212, %v215
    %s217 = sld [smem:[#allocation9 + $0x82]]
    %v218 = vstv %s217
    %v219 = vmul.f32 %v218, %v189
    %v220 = vadd.f32 %v216, %v219
    %s221 = sld [smem:[#allocation11 + $0x1]]
    %v222 = vstv %s221
    %v223 = vadd.f32 %v220, %v222
    %v224 = vmul.f32 %v223, 0.5
    %v225 = vtanh.pop %v224
    %v226 = vmul.f32 %v225, 0.5
    %v227 = vadd.f32 %v226, 0.5
    %s228 = sld [smem:[#allocation12]]
    %v229 = vstv %s228
    %v230 = vmul.f32 %v229, %v208
    %v231 = vadd.f32 %v230, 0.0
    %s232 = sld [smem:[#allocation12 + $0x1]]
    %v233 = vstv %s232
    %v234 = vmul.f32 %v233, %v227
    %v235 = vadd.f32 %v231, %v234
    %s236 = sld [smem:[#allocation2]]
    %v237 = vstv %s236
    %v238 = vadd.f32 %v235, %v237
    %v239 = vmul.f32 %v238, 0.5
    %v240 = vtanh.pop %v239
    %v241 = vmul.f32 %v240, 0.5
    %v242 = vadd.f32 %v241, 0.5
    %243 = vst [vmem:[#allocation15] sm:$0xff] %v242
    // Predicated region
    $region54: #{tpu_custom_call.1} parent=1 // pred_check
      _
    $region55: #{tpu_custom_call.1} parent=1 // pred_check_branch
      %245 = sbr.rel (0) target = $region57
    $region56: #{tpu_custom_call.1} parent=1 // pred_region
      %s247 = ssub.s32 128, 128
      %248 = vsyncadd [#allocation5], %s247
      %s250 = sshll.u32 [#allocation15], 4
      %s251 = int_to_ptr.vmem [resolvable:$true] %s250
      %253 = dma.vmem_to_hbm [thread:$0]  %s251, 128, %s7, [#allocation5]
    $region57: #{tpu_custom_call.1} parent=1 // pred_fallthru
      _
    // Predicated region
    $region58: #{tpu_custom_call.1} parent=1 // pred_check
      _
    $region59: #{tpu_custom_call.1} parent=1 // pred_check_branch
      %255 = sbr.rel (0) target = $region61
    $region60: #{tpu_custom_call.1} parent=1 // pred_region
      %256 = dma.done [#allocation5], 128
    $region61: #{tpu_custom_call.1} parent=1 // pred_fallthru
      _
    %257 = vsyncpa [#allocation4], 1
    %258 = vsyncpa [#allocation5], 1
    %259 = vsyncpa [#allocation6], 1
    %260 = vsyncpa [#allocation7], 1
    %261 = vsyncpa [#allocation10], 1
    %262 = vsyncpa [#allocation13], 1

</llo_original>
